<compile_context>
chip_gen: v7x
topology: tpu7x:2x2x1
jax: 0.10.0
libtpu: 0.0.40
codegen_flags: <defaults>
</compile_context>

<pallas_src>
import jax
import jax.numpy as jnp
from jax import lax
from jax.experimental import pallas as pl
from jax.experimental.pallas import tpu as pltpu


TOTAL_LENGTH = 1000  # hardcoded in the PyTorch forward (pad_packed total_length)


# ----------------------------- Pallas kernel --------------------------------
def dkt_lstm_kernel(xp_ref, w_hh_ref, hs_ref, h_ref, c_ref):
    """Serial LSTM recurrence only (gates pre-ordered as i, f, o, g).

    xp_ref : (Tc, B, 4H)  precomputed W_ih @ x_t + (b_ih + b_hh), gate dim on lanes
    w_hh_ref: (H, 4H)     recurrent weight, transposed -> (B,H)@(H,4H)
    hs_ref : (Tc, B, H)   hidden states for this time chunk (output)
    h_ref/c_ref: (B, H)   VMEM scratch, persists across grid steps (time chunks)
    """
    H = h_ref.shape[1]
    chunk = xp_ref.shape[0]

    @pl.when(pl.program_id(0) == 0)
    def _():
        h_ref[...] = jnp.zeros_like(h_ref)
        c_ref[...] = jnp.zeros_like(c_ref)

    w_hh = w_hh_ref[...]  # hoisted; stays in vregs/VMEM across all steps

    def step(t, carry):
        h, c = carry
        # Only the recurrent matmul is on the serial critical path.
        gates = xp_ref[t] + jnp.dot(h, w_hh,
                                    preferred_element_type=jnp.float32)  # (B, 4H)

        # Gate order (pre-permuted in wrapper): i | f | o | g
        sig = jax.nn.sigmoid(gates[:, 0:3 * H])   # one EUP pass over i,f,o
        g = jnp.tanh(gates[:, 3 * H:4 * H])
        i = sig[:, 0 * H:1 * H]
        f = sig[:, 1 * H:2 * H]
        o = sig[:, 2 * H:3 * H]

        c = f * c + i * g
        h = o * jnp.tanh(c)
        hs_ref[t] = h                              # plain store; Linear is outside
        return (h, c)

    h, c = lax.fori_loop(0, chunk, step, (h_ref[...], c_ref[...]),
                         unroll=min(8, chunk))
    h_ref[...] = h
    c_ref[...] = c


# ------------------------------- wrapper -------------------------------------
def dkt_embednet_forward(params, x1, x2, x3, x_sz):
    """Full DKT_Embednet forward.

    Embedding gathers, the time-parallel input projection, the output Linear,
    the length mask and the pad-to-1000 are XLA glue (parallel, MXU/VPU
    friendly); only the serial LSTM recurrence runs in the Pallas kernel.
    """
    B, T = x1.shape
    H = params["w_hh"].shape[1]

    # x[x == -1] = 0
    x1 = jnp.where(x1 == -1, 0, x1)
    x2 = jnp.where(x2 == -1, 0, x2)
    x3 = jnp.where(x3 == -1, 0, x3)

    # Embedding lookups (padding_idx=0 rows are zero).
    stemb = params["stud_embed"][x1]     # (B, T, ds)
    skemb = params["skill_embed"][x2]    # (B, T, dk)
    qsemb = params["ques_embed"][x3]     # (B, T, dq)
    x = jnp.concatenate([stemb, skemb, qsemb], axis=2).astype(jnp.float32)  # (B,T,Din)

    # Reorder PyTorch gate layout (i, f, g, o) -> (i, f, o, g) so the kernel
    # can apply a single contiguous sigmoid over the first 3H lanes.
    gate_idx = jnp.concatenate([jnp.arange(0, H), jnp.arange(H, 2 * H),
                                jnp.arange(3 * H, 4 * H), jnp.arange(2 * H, 3 * H)])
    w_ih_r = params["w_ih"].astype(jnp.float32)[gate_idx]                    # (4H, Din)
    w_hh_r = params["w_hh"].astype(jnp.float32)[gate_idx]                    # (4H, H)
    b_comb = (params["b_ih"] + params["b_hh"]).astype(jnp.float32)[gate_idx]  # (4H,)

    # Hoisted, time-parallel input projection + combined bias (one big matmul).
    xp = jnp.einsum("btd,gd->tbg", x, w_ih_r)                                # (T,B,4H)
    xp = xp + b_comb[None, None, :]

    # Chunk time so xp streams through VMEM via BlockSpec double-buffering.
    chunk = min(128, ((T + 7) // 8) * 8)
    T_pad = ((T + chunk - 1) // chunk) * chunk
    if T_pad != T:
        xp = jnp.concatenate(
            [xp, jnp.zeros((T_pad - T, B, 4 * H), jnp.float32)], axis=0)

    w_hh_t = w_hh_r.T                                                        # (H, 4H)

    hs = pl.pallas_call(
        dkt_lstm_kernel,
        out_shape=jax.ShapeDtypeStruct((T_pad, B, H), jnp.float32),
        grid_spec=pltpu.PrefetchScalarGridSpec(
            num_scalar_prefetch=0,
            grid=(T_pad // chunk,),
            in_specs=[
                pl.BlockSpec((chunk, B, 4 * H), lambda i: (i, 0, 0)),
                pl.BlockSpec((H, 4 * H), lambda i: (0, 0)),
            ],
            out_specs=pl.BlockSpec((chunk, B, H), lambda i: (i, 0, 0)),
            scratch_shapes=[pltpu.VMEM((B, H), jnp.float32),   # h
                            pltpu.VMEM((B, H), jnp.float32)],  # c
        ),
        compiler_params=pltpu.CompilerParams(
            dimension_semantics=("arbitrary",)),               # serial recurrence
    )(xp, w_hh_t)

    hs = hs[:T]                                                # (T, B, H)

    # pack/pad semantics: zero hidden states at t >= length, then Linear once.
    mask = (jnp.arange(T)[:, None] < x_sz.reshape(1, B)).astype(jnp.float32)  # (T,B)
    hs = hs * mask[:, :, None]

    lin_w = params["lin_w"].reshape(H).astype(jnp.float32)
    lin_b = params["lin_b"][0].astype(jnp.float32)
    out_bt = jnp.einsum("tbh,h->bt", hs, lin_w) + lin_b        # (B, T)

    # pad_packed_sequence(total_length=1000) pads with zeros; Linear(0) = bias.
    pad = jnp.full((B, TOTAL_LENGTH - T), lin_b, dtype=jnp.float32)
    return jnp.concatenate([out_bt, pad], axis=1)              # (B, 1000)


# ------------------------ deterministic parameter init -----------------------
def init_params(key, stud_count, stud_dim, skill_count, skill_dim,
                ques_count, ques_dim, hidden):
    ks = jax.random.split(key, 8)
    din = stud_dim + skill_dim + ques_dim
    k = 1.0 / jnp.sqrt(hidden)

    def emb(k_, n, d):
        e = jax.random.normal(k_, (n, d), dtype=jnp.float32)
        return e.at[0].set(0.0)  # padding_idx=0

    return {
        "stud_embed": emb(ks[0], stud_count, stud_dim),
        "skill_embed": emb(ks[1], skill_count, skill_dim),
        "ques_embed": emb(ks[2], ques_count, ques_dim),
        "w_ih": jax.random.uniform(ks[3], (4 * hidden, din), jnp.float32, -k, k),
        "w_hh": jax.random.uniform(ks[4], (4 * hidden, hidden), jnp.float32, -k, k),
        "b_ih": jax.random.uniform(ks[5], (4 * hidden,), jnp.float32, -k, k),
        "b_hh": jax.random.uniform(ks[6], (4 * hidden,), jnp.float32, -k, k),
        "lin_w": jax.random.uniform(ks[7], (1, hidden), jnp.float32, -k, k),
        "lin_b": jnp.zeros((1,), jnp.float32) + 0.05,
    }


# -------------------------- pure-JAX reference check -------------------------
def dkt_reference(params, x1, x2, x3, x_sz):
    B, T = x1.shape
    H = params["w_hh"].shape[1]
    x1 = jnp.where(x1 == -1, 0, x1)
    x2 = jnp.where(x2 == -1, 0, x2)
    x3 = jnp.where(x3 == -1, 0, x3)
    x = jnp.concatenate([params["stud_embed"][x1], params["skill_embed"][x2],
                         params["ques_embed"][x3]], axis=2)   # (B, T, Din)
    x = jnp.transpose(x, (1, 0, 2))                           # (T, B, Din)
    b = (params["b_ih"] + params["b_hh"])[None, :]

    def step(carry, xt):
        h, c = carry
        g = xt @ params["w_ih"].T + h @ params["w_hh"].T + b
        i, f, gg, o = jnp.split(g, 4, axis=1)                 # PyTorch order i,f,g,o
        c = jax.nn.sigmoid(f) * c + jax.nn.sigmoid(i) * jnp.tanh(gg)
        h = jax.nn.sigmoid(o) * jnp.tanh(c)
        return (h, c), h

    h0 = jnp.zeros((B, H), jnp.float32)
    _, hs = lax.scan(step, (h0, h0), x)                       # (T, B, H)
    mask = (jnp.arange(T)[:, None] < x_sz[None, :]).astype(jnp.float32)
    hs = hs * mask[:, :, None]
    rout = jnp.zeros((TOTAL_LENGTH, B, H), jnp.float32).at[:T].set(hs)
    out = rout @ params["lin_w"].T + params["lin_b"]          # (1000, B, 1)
    return jnp.transpose(out[..., 0], (1, 0))                 # (B, 1000)


# ---------------------------------- main --------------------------------------
if __name__ == "__main__":
    B, T = 2, 8
    stud_count, stud_dim = 10, 8
    skill_count, skill_dim = 6, 8
    ques_count, ques_dim = 20, 16
    hidden = 32

    key = jax.random.PRNGKey(0)
    kp, k1, k2, k3 = jax.random.split(key, 4)
    params = init_params(kp, stud_count, stud_dim, skill_count, skill_dim,
                         ques_count, ques_dim, hidden)

    x_sz = jnp.array([8, 5], dtype=jnp.int32)                 # unpadded lengths
    x1 = jax.random.randint(k1, (B, T), 1, stud_count, dtype=jnp.int32)
    x2 = jax.random.randint(k2, (B, T), 1, skill_count, dtype=jnp.int32)
    x3 = jax.random.randint(k3, (B, T), 1, ques_count, dtype=jnp.int32)
    # mark padded positions with -1 like the dataloader would
    pad_mask = jnp.arange(T)[None, :] >= x_sz[:, None]
    x1 = jnp.where(pad_mask, -1, x1)
    x2 = jnp.where(pad_mask, -1, x2)
    x3 = jnp.where(pad_mask, -1, x3)

    out = dkt_embednet_forward(params, x1, x2, x3, x_sz)
    out = jax.block_until_ready(out)
    assert out.shape == (B, TOTAL_LENGTH), out.shape

    ref = jax.block_until_ready(dkt_reference(params, x1, x2, x3, x_sz))
    assert jnp.allclose(out, ref, atol=2e-3, rtol=2e-3), \
        float(jnp.max(jnp.abs(out - ref)))

    print("KERNEL_OK")
</pallas_src>

<mosaic_0001>
module attributes {stable_mosaic.version = 11 : i64} {
  func.func @dkt_lstm_kernel(%arg0: i32, %arg1: memref<8x2x128xf32, #tpu.memory_space<vmem>>, %arg2: memref<32x128xf32, #tpu.memory_space<vmem>>, %arg3: memref<8x2x32xf32, #tpu.memory_space<vmem>>, %arg4: memref<2x32xf32, #tpu.memory_space<vmem>>, %arg5: memref<2x32xf32, #tpu.memory_space<vmem>>) attributes {dimension_semantics = [#tpu.dimension_semantics<arbitrary>], iteration_bounds = array<i64: 1>, scalar_prefetch = 0 : i64, scratch_operands = 2 : i64, tpu.core_type = #tpu.core_type<tc>, window_params = [{transform_indices = @transform_0, window_bounds = array<i64: 8, 2, 128>}, {pipeline_mode = #tpu.pipeline_mode<synchronous>, transform_indices = @transform_1, window_bounds = array<i64: 32, 128>}, {transform_indices = @transform_2, window_bounds = array<i64: 8, 2, 32>}]} {
    %c0_i32 = arith.constant 0 : i32
    %0 = arith.cmpi eq, %arg0, %c0_i32 : i32
    %1 = arith.extui %0 : i1 to i32
    %c0_i32_0 = arith.constant 0 : i32
    %2 = arith.cmpi ne, %1, %c0_i32_0 : i32
    scf.if %2 {
      %cst_58 = arith.constant 0.000000e+00 : f32
      %208 = vector.broadcast %cst_58 : f32 to vector<2x32xf32>
      %c0_59 = arith.constant 0 : index
      %c0_60 = arith.constant 0 : index
      %209 = vector.load %arg4[%c0_59, %c0_60] : memref<2x32xf32, #tpu.memory_space<vmem>>, vector<2x32xf32>
      tpu.vector_store %arg4[%c0_59, %c0_60], %208 {strides = array<i32>} : memref<2x32xf32, #tpu.memory_space<vmem>>, vector<2x32xf32>,
      %cst_61 = arith.constant 0.000000e+00 : f32
      %210 = vector.broadcast %cst_61 : f32 to vector<2x32xf32>
      %c0_62 = arith.constant 0 : index
      %c0_63 = arith.constant 0 : index
      %211 = vector.load %arg5[%c0_62, %c0_63] : memref<2x32xf32, #tpu.memory_space<vmem>>, vector<2x32xf32>
      tpu.vector_store %arg5[%c0_62, %c0_63], %210 {strides = array<i32>} : memref<2x32xf32, #tpu.memory_space<vmem>>, vector<2x32xf32>,
    } else {
    }
    %c0 = arith.constant 0 : index
    %c0_1 = arith.constant 0 : index
    %3 = vector.load %arg2[%c0, %c0_1] : memref<32x128xf32, #tpu.memory_space<vmem>>, vector<32x128xf32>
    %c0_2 = arith.constant 0 : index
    %c0_3 = arith.constant 0 : index
    %4 = vector.load %arg4[%c0_2, %c0_3] : memref<2x32xf32, #tpu.memory_space<vmem>>, vector<2x32xf32>
    %c0_4 = arith.constant 0 : index
    %c0_5 = arith.constant 0 : index
    %5 = vector.load %arg5[%c0_4, %c0_5] : memref<2x32xf32, #tpu.memory_space<vmem>>, vector<2x32xf32>
    %c0_i32_6 = arith.constant 0 : i32
    %6 = arith.index_cast %c0_i32_6 : i32 to index
    %c0_7 = arith.constant 0 : index
    %c0_8 = arith.constant 0 : index
    %7 = vector.load %arg1[%6, %c0_7, %c0_8] : memref<8x2x128xf32, #tpu.memory_space<vmem>>, vector<1x2x128xf32>
    %8 = vector.shape_cast %7 : vector<1x2x128xf32> to vector<2x128xf32>
    %cst = arith.constant dense<0.000000e+00> : vector<2x128xf32>
    %9 = tpu.matmul %4, %3, %cst {dimension_numbers = #tpu.dot_dimension_numbers<[1], [0], [0], [1], [0, 0, 1, 1], [], []>} : vector<2x32xf32>, vector<32x128xf32>, vector<2x128xf32> -> vector<2x128xf32>
    %10 = arith.addf %8, %9 : vector<2x128xf32>
    %11 = vector.extract_strided_slice %10 {offsets = [0, 0], sizes = [2, 96], strides = [1, 1]} : vector<2x128xf32> to vector<2x96xf32>
    %12 = arith.negf %11 : vector<2x96xf32>
    %13 = math.exp %12 : vector<2x96xf32>
    %cst_9 = arith.constant 1.000000e+00 : f32
    %14 = vector.broadcast %cst_9 : f32 to vector<2x96xf32>
    %15 = arith.addf %14, %13 : vector<2x96xf32>
    %16 = arith.divf %14, %15 : vector<2x96xf32>
    %17 = vector.extract_strided_slice %10 {offsets = [0, 96], sizes = [2, 32], strides = [1, 1]} : vector<2x128xf32> to vector<2x32xf32>
    %18 = math.tanh %17 : vector<2x32xf32>
    %19 = vector.extract_strided_slice %16 {offsets = [0, 0], sizes = [2, 32], strides = [1, 1]} : vector<2x96xf32> to vector<2x32xf32>
    %20 = vector.extract_strided_slice %16 {offsets = [0, 32], sizes = [2, 32], strides = [1, 1]} : vector<2x96xf32> to vector<2x32xf32>
    %21 = vector.extract_strided_slice %16 {offsets = [0, 64], sizes = [2, 32], strides = [1, 1]} : vector<2x96xf32> to vector<2x32xf32>
    %22 = arith.mulf %20, %5 : vector<2x32xf32>
    %23 = arith.mulf %19, %18 : vector<2x32xf32>
    %24 = arith.addf %22, %23 : vector<2x32xf32>
    %25 = math.tanh %24 : vector<2x32xf32>
    %26 = arith.mulf %21, %25 : vector<2x32xf32>
    %27 = arith.index_cast %c0_i32_6 : i32 to index
    %c0_10 = arith.constant 0 : index
    %c0_11 = arith.constant 0 : index
    %28 = vector.load %arg3[%27, %c0_10, %c0_11] : memref<8x2x32xf32, #tpu.memory_space<vmem>>, vector<1x2x32xf32>
    %29 = vector.shape_cast %28 : vector<1x2x32xf32> to vector<2x32xf32>
    %30 = vector.shape_cast %26 : vector<2x32xf32> to vector<1x2x32xf32>
    tpu.vector_store %arg3[%27, %c0_10, %c0_11], %30 {strides = array<i32>} : memref<8x2x32xf32, #tpu.memory_space<vmem>>, vector<1x2x32xf32>,
    %c1_i32 = arith.constant 1 : i32
    %31 = arith.index_cast %c1_i32 : i32 to index
    %c0_12 = arith.constant 0 : index
    %c0_13 = arith.constant 0 : index
    %32 = vector.load %arg1[%31, %c0_12, %c0_13] : memref<8x2x128xf32, #tpu.memory_space<vmem>>, vector<1x2x128xf32>
    %33 = vector.shape_cast %32 : vector<1x2x128xf32> to vector<2x128xf32>
    %cst_14 = arith.constant dense<0.000000e+00> : vector<2x128xf32>
    %34 = tpu.matmul %26, %3, %cst_14 {dimension_numbers = #tpu.dot_dimension_numbers<[1], [0], [0], [1], [0, 0, 1, 1], [], []>} : vector<2x32xf32>, vector<32x128xf32>, vector<2x128xf32> -> vector<2x128xf32>
    %35 = arith.addf %33, %34 : vector<2x128xf32>
    %36 = vector.extract_strided_slice %35 {offsets = [0, 0], sizes = [2, 96], strides = [1, 1]} : vector<2x128xf32> to vector<2x96xf32>
    %37 = arith.negf %36 : vector<2x96xf32>
    %38 = math.exp %37 : vector<2x96xf32>
    %cst_15 = arith.constant 1.000000e+00 : f32
    %39 = vector.broadcast %cst_15 : f32 to vector<2x96xf32>
    %40 = arith.addf %39, %38 : vector<2x96xf32>
    %41 = arith.divf %39, %40 : vector<2x96xf32>
    %42 = vector.extract_strided_slice %35 {offsets = [0, 96], sizes = [2, 32], strides = [1, 1]} : vector<2x128xf32> to vector<2x32xf32>
    %43 = math.tanh %42 : vector<2x32xf32>
    %44 = vector.extract_strided_slice %41 {offsets = [0, 0], sizes = [2, 32], strides = [1, 1]} : vector<2x96xf32> to vector<2x32xf32>
    %45 = vector.extract_strided_slice %41 {offsets = [0, 32], sizes = [2, 32], strides = [1, 1]} : vector<2x96xf32> to vector<2x32xf32>
    %46 = vector.extract_strided_slice %41 {offsets = [0, 64], sizes = [2, 32], strides = [1, 1]} : vector<2x96xf32> to vector<2x32xf32>
    %47 = arith.mulf %45, %24 : vector<2x32xf32>
    %48 = arith.mulf %44, %43 : vector<2x32xf32>
    %49 = arith.addf %47, %48 : vector<2x32xf32>
    %50 = math.tanh %49 : vector<2x32xf32>
    %51 = arith.mulf %46, %50 : vector<2x32xf32>
    %52 = arith.index_cast %c1_i32 : i32 to index
    %c0_16 = arith.constant 0 : index
    %c0_17 = arith.constant 0 : index
    %53 = vector.load %arg3[%52, %c0_16, %c0_17] : memref<8x2x32xf32, #tpu.memory_space<vmem>>, vector<1x2x32xf32>
    %54 = vector.shape_cast %53 : vector<1x2x32xf32> to vector<2x32xf32>
    %55 = vector.shape_cast %51 : vector<2x32xf32> to vector<1x2x32xf32>
    tpu.vector_store %arg3[%52, %c0_16, %c0_17], %55 {strides = array<i32>} : memref<8x2x32xf32, #tpu.memory_space<vmem>>, vector<1x2x32xf32>,
    %c2_i32 = arith.constant 2 : i32
    %56 = arith.index_cast %c2_i32 : i32 to index
    %c0_18 = arith.constant 0 : index
    %c0_19 = arith.constant 0 : index
    %57 = vector.load %arg1[%56, %c0_18, %c0_19] : memref<8x2x128xf32, #tpu.memory_space<vmem>>, vector<1x2x128xf32>
    %58 = vector.shape_cast %57 : vector<1x2x128xf32> to vector<2x128xf32>
    %cst_20 = arith.constant dense<0.000000e+00> : vector<2x128xf32>
    %59 = tpu.matmul %51, %3, %cst_20 {dimension_numbers = #tpu.dot_dimension_numbers<[1], [0], [0], [1], [0, 0, 1, 1], [], []>} : vector<2x32xf32>, vector<32x128xf32>, vector<2x128xf32> -> vector<2x128xf32>
    %60 = arith.addf %58, %59 : vector<2x128xf32>
    %61 = vector.extract_strided_slice %60 {offsets = [0, 0], sizes = [2, 96], strides = [1, 1]} : vector<2x128xf32> to vector<2x96xf32>
    %62 = arith.negf %61 : vector<2x96xf32>
    %63 = math.exp %62 : vector<2x96xf32>
    %cst_21 = arith.constant 1.000000e+00 : f32
    %64 = vector.broadcast %cst_21 : f32 to vector<2x96xf32>
    %65 = arith.addf %64, %63 : vector<2x96xf32>
    %66 = arith.divf %64, %65 : vector<2x96xf32>
    %67 = vector.extract_strided_slice %60 {offsets = [0, 96], sizes = [2, 32], strides = [1, 1]} : vector<2x128xf32> to vector<2x32xf32>
    %68 = math.tanh %67 : vector<2x32xf32>
    %69 = vector.extract_strided_slice %66 {offsets = [0, 0], sizes = [2, 32], strides = [1, 1]} : vector<2x96xf32> to vector<2x32xf32>
    %70 = vector.extract_strided_slice %66 {offsets = [0, 32], sizes = [2, 32], strides = [1, 1]} : vector<2x96xf32> to vector<2x32xf32>
    %71 = vector.extract_strided_slice %66 {offsets = [0, 64], sizes = [2, 32], strides = [1, 1]} : vector<2x96xf32> to vector<2x32xf32>
    %72 = arith.mulf %70, %49 : vector<2x32xf32>
    %73 = arith.mulf %69, %68 : vector<2x32xf32>
    %74 = arith.addf %72, %73 : vector<2x32xf32>
    %75 = math.tanh %74 : vector<2x32xf32>
    %76 = arith.mulf %71, %75 : vector<2x32xf32>
    %77 = arith.index_cast %c2_i32 : i32 to index
    %c0_22 = arith.constant 0 : index
    %c0_23 = arith.constant 0 : index
    %78 = vector.load %arg3[%77, %c0_22, %c0_23] : memref<8x2x32xf32, #tpu.memory_space<vmem>>, vector<1x2x32xf32>
    %79 = vector.shape_cast %78 : vector<1x2x32xf32> to vector<2x32xf32>
    %80 = vector.shape_cast %76 : vector<2x32xf32> to vector<1x2x32xf32>
    tpu.vector_store %arg3[%77, %c0_22, %c0_23], %80 {strides = array<i32>} : memref<8x2x32xf32, #tpu.memory_space<vmem>>, vector<1x2x32xf32>,
    %c3_i32 = arith.constant 3 : i32
    %81 = arith.index_cast %c3_i32 : i32 to index
    %c0_24 = arith.constant 0 : index
    %c0_25 = arith.constant 0 : index
    %82 = vector.load %arg1[%81, %c0_24, %c0_25] : memref<8x2x128xf32, #tpu.memory_space<vmem>>, vector<1x2x128xf32>
    %83 = vector.shape_cast %82 : vector<1x2x128xf32> to vector<2x128xf32>
    %cst_26 = arith.constant dense<0.000000e+00> : vector<2x128xf32>
    %84 = tpu.matmul %76, %3, %cst_26 {dimension_numbers = #tpu.dot_dimension_numbers<[1], [0], [0], [1], [0, 0, 1, 1], [], []>} : vector<2x32xf32>, vector<32x128xf32>, vector<2x128xf32> -> vector<2x128xf32>
    %85 = arith.addf %83, %84 : vector<2x128xf32>
    %86 = vector.extract_strided_slice %85 {offsets = [0, 0], sizes = [2, 96], strides = [1, 1]} : vector<2x128xf32> to vector<2x96xf32>
    %87 = arith.negf %86 : vector<2x96xf32>
    %88 = math.exp %87 : vector<2x96xf32>
    %cst_27 = arith.constant 1.000000e+00 : f32
    %89 = vector.broadcast %cst_27 : f32 to vector<2x96xf32>
    %90 = arith.addf %89, %88 : vector<2x96xf32>
    %91 = arith.divf %89, %90 : vector<2x96xf32>
    %92 = vector.extract_strided_slice %85 {offsets = [0, 96], sizes = [2, 32], strides = [1, 1]} : vector<2x128xf32> to vector<2x32xf32>
    %93 = math.tanh %92 : vector<2x32xf32>
    %94 = vector.extract_strided_slice %91 {offsets = [0, 0], sizes = [2, 32], strides = [1, 1]} : vector<2x96xf32> to vector<2x32xf32>
    %95 = vector.extract_strided_slice %91 {offsets = [0, 32], sizes = [2, 32], strides = [1, 1]} : vector<2x96xf32> to vector<2x32xf32>
    %96 = vector.extract_strided_slice %91 {offsets = [0, 64], sizes = [2, 32], strides = [1, 1]} : vector<2x96xf32> to vector<2x32xf32>
    %97 = arith.mulf %95, %74 : vector<2x32xf32>
    %98 = arith.mulf %94, %93 : vector<2x32xf32>
    %99 = arith.addf %97, %98 : vector<2x32xf32>
    %100 = math.tanh %99 : vector<2x32xf32>
    %101 = arith.mulf %96, %100 : vector<2x32xf32>
    %102 = arith.index_cast %c3_i32 : i32 to index
    %c0_28 = arith.constant 0 : index
    %c0_29 = arith.constant 0 : index
    %103 = vector.load %arg3[%102, %c0_28, %c0_29] : memref<8x2x32xf32, #tpu.memory_space<vmem>>, vector<1x2x32xf32>
    %104 = vector.shape_cast %103 : vector<1x2x32xf32> to vector<2x32xf32>
    %105 = vector.shape_cast %101 : vector<2x32xf32> to vector<1x2x32xf32>
    tpu.vector_store %arg3[%102, %c0_28, %c0_29], %105 {strides = array<i32>} : memref<8x2x32xf32, #tpu.memory_space<vmem>>, vector<1x2x32xf32>,
    %c4_i32 = arith.constant 4 : i32
    %106 = arith.index_cast %c4_i32 : i32 to index
    %c0_30 = arith.constant 0 : index
    %c0_31 = arith.constant 0 : index
    %107 = vector.load %arg1[%106, %c0_30, %c0_31] : memref<8x2x128xf32, #tpu.memory_space<vmem>>, vector<1x2x128xf32>
    %108 = vector.shape_cast %107 : vector<1x2x128xf32> to vector<2x128xf32>
    %cst_32 = arith.constant dense<0.000000e+00> : vector<2x128xf32>
    %109 = tpu.matmul %101, %3, %cst_32 {dimension_numbers = #tpu.dot_dimension_numbers<[1], [0], [0], [1], [0, 0, 1, 1], [], []>} : vector<2x32xf32>, vector<32x128xf32>, vector<2x128xf32> -> vector<2x128xf32>
    %110 = arith.addf %108, %109 : vector<2x128xf32>
    %111 = vector.extract_strided_slice %110 {offsets = [0, 0], sizes = [2, 96], strides = [1, 1]} : vector<2x128xf32> to vector<2x96xf32>
    %112 = arith.negf %111 : vector<2x96xf32>
    %113 = math.exp %112 : vector<2x96xf32>
    %cst_33 = arith.constant 1.000000e+00 : f32
    %114 = vector.broadcast %cst_33 : f32 to vector<2x96xf32>
    %115 = arith.addf %114, %113 : vector<2x96xf32>
    %116 = arith.divf %114, %115 : vector<2x96xf32>
    %117 = vector.extract_strided_slice %110 {offsets = [0, 96], sizes = [2, 32], strides = [1, 1]} : vector<2x128xf32> to vector<2x32xf32>
    %118 = math.tanh %117 : vector<2x32xf32>
    %119 = vector.extract_strided_slice %116 {offsets = [0, 0], sizes = [2, 32], strides = [1, 1]} : vector<2x96xf32> to vector<2x32xf32>
    %120 = vector.extract_strided_slice %116 {offsets = [0, 32], sizes = [2, 32], strides = [1, 1]} : vector<2x96xf32> to vector<2x32xf32>
    %121 = vector.extract_strided_slice %116 {offsets = [0, 64], sizes = [2, 32], strides = [1, 1]} : vector<2x96xf32> to vector<2x32xf32>
    %122 = arith.mulf %120, %99 : vector<2x32xf32>
    %123 = arith.mulf %119, %118 : vector<2x32xf32>
    %124 = arith.addf %122, %123 : vector<2x32xf32>
    %125 = math.tanh %124 : vector<2x32xf32>
    %126 = arith.mulf %121, %125 : vector<2x32xf32>
    %127 = arith.index_cast %c4_i32 : i32 to index
    %c0_34 = arith.constant 0 : index
    %c0_35 = arith.constant 0 : index
    %128 = vector.load %arg3[%127, %c0_34, %c0_35] : memref<8x2x32xf32, #tpu.memory_space<vmem>>, vector<1x2x32xf32>
    %129 = vector.shape_cast %128 : vector<1x2x32xf32> to vector<2x32xf32>
    %130 = vector.shape_cast %126 : vector<2x32xf32> to vector<1x2x32xf32>
    tpu.vector_store %arg3[%127, %c0_34, %c0_35], %130 {strides = array<i32>} : memref<8x2x32xf32, #tpu.memory_space<vmem>>, vector<1x2x32xf32>,
    %c5_i32 = arith.constant 5 : i32
    %131 = arith.index_cast %c5_i32 : i32 to index
    %c0_36 = arith.constant 0 : index
    %c0_37 = arith.constant 0 : index
    %132 = vector.load %arg1[%131, %c0_36, %c0_37] : memref<8x2x128xf32, #tpu.memory_space<vmem>>, vector<1x2x128xf32>
    %133 = vector.shape_cast %132 : vector<1x2x128xf32> to vector<2x128xf32>
    %cst_38 = arith.constant dense<0.000000e+00> : vector<2x128xf32>
    %134 = tpu.matmul %126, %3, %cst_38 {dimension_numbers = #tpu.dot_dimension_numbers<[1], [0], [0], [1], [0, 0, 1, 1], [], []>} : vector<2x32xf32>, vector<32x128xf32>, vector<2x128xf32> -> vector<2x128xf32>
    %135 = arith.addf %133, %134 : vector<2x128xf32>
    %136 = vector.extract_strided_slice %135 {offsets = [0, 0], sizes = [2, 96], strides = [1, 1]} : vector<2x128xf32> to vector<2x96xf32>
    %137 = arith.negf %136 : vector<2x96xf32>
    %138 = math.exp %137 : vector<2x96xf32>
    %cst_39 = arith.constant 1.000000e+00 : f32
    %139 = vector.broadcast %cst_39 : f32 to vector<2x96xf32>
    %140 = arith.addf %139, %138 : vector<2x96xf32>
    %141 = arith.divf %139, %140 : vector<2x96xf32>
    %142 = vector.extract_strided_slice %135 {offsets = [0, 96], sizes = [2, 32], strides = [1, 1]} : vector<2x128xf32> to vector<2x32xf32>
    %143 = math.tanh %142 : vector<2x32xf32>
    %144 = vector.extract_strided_slice %141 {offsets = [0, 0], sizes = [2, 32], strides = [1, 1]} : vector<2x96xf32> to vector<2x32xf32>
    %145 = vector.extract_strided_slice %141 {offsets = [0, 32], sizes = [2, 32], strides = [1, 1]} : vector<2x96xf32> to vector<2x32xf32>
    %146 = vector.extract_strided_slice %141 {offsets = [0, 64], sizes = [2, 32], strides = [1, 1]} : vector<2x96xf32> to vector<2x32xf32>
    %147 = arith.mulf %145, %124 : vector<2x32xf32>
    %148 = arith.mulf %144, %143 : vector<2x32xf32>
    %149 = arith.addf %147, %148 : vector<2x32xf32>
    %150 = math.tanh %149 : vector<2x32xf32>
    %151 = arith.mulf %146, %150 : vector<2x32xf32>
    %152 = arith.index_cast %c5_i32 : i32 to index
    %c0_40 = arith.constant 0 : index
    %c0_41 = arith.constant 0 : index
    %153 = vector.load %arg3[%152, %c0_40, %c0_41] : memref<8x2x32xf32, #tpu.memory_space<vmem>>, vector<1x2x32xf32>
    %154 = vector.shape_cast %153 : vector<1x2x32xf32> to vector<2x32xf32>
    %155 = vector.shape_cast %151 : vector<2x32xf32> to vector<1x2x32xf32>
    tpu.vector_store %arg3[%152, %c0_40, %c0_41], %155 {strides = array<i32>} : memref<8x2x32xf32, #tpu.memory_space<vmem>>, vector<1x2x32xf32>,
    %c6_i32 = arith.constant 6 : i32
    %156 = arith.index_cast %c6_i32 : i32 to index
    %c0_42 = arith.constant 0 : index
    %c0_43 = arith.constant 0 : index
    %157 = vector.load %arg1[%156, %c0_42, %c0_43] : memref<8x2x128xf32, #tpu.memory_space<vmem>>, vector<1x2x128xf32>
    %158 = vector.shape_cast %157 : vector<1x2x128xf32> to vector<2x128xf32>
    %cst_44 = arith.constant dense<0.000000e+00> : vector<2x128xf32>
    %159 = tpu.matmul %151, %3, %cst_44 {dimension_numbers = #tpu.dot_dimension_numbers<[1], [0], [0], [1], [0, 0, 1, 1], [], []>} : vector<2x32xf32>, vector<32x128xf32>, vector<2x128xf32> -> vector<2x128xf32>
    %160 = arith.addf %158, %159 : vector<2x128xf32>
    %161 = vector.extract_strided_slice %160 {offsets = [0, 0], sizes = [2, 96], strides = [1, 1]} : vector<2x128xf32> to vector<2x96xf32>
    %162 = arith.negf %161 : vector<2x96xf32>
    %163 = math.exp %162 : vector<2x96xf32>
    %cst_45 = arith.constant 1.000000e+00 : f32
    %164 = vector.broadcast %cst_45 : f32 to vector<2x96xf32>
    %165 = arith.addf %164, %163 : vector<2x96xf32>
    %166 = arith.divf %164, %165 : vector<2x96xf32>
    %167 = vector.extract_strided_slice %160 {offsets = [0, 96], sizes = [2, 32], strides = [1, 1]} : vector<2x128xf32> to vector<2x32xf32>
    %168 = math.tanh %167 : vector<2x32xf32>
    %169 = vector.extract_strided_slice %166 {offsets = [0, 0], sizes = [2, 32], strides = [1, 1]} : vector<2x96xf32> to vector<2x32xf32>
    %170 = vector.extract_strided_slice %166 {offsets = [0, 32], sizes = [2, 32], strides = [1, 1]} : vector<2x96xf32> to vector<2x32xf32>
    %171 = vector.extract_strided_slice %166 {offsets = [0, 64], sizes = [2, 32], strides = [1, 1]} : vector<2x96xf32> to vector<2x32xf32>
    %172 = arith.mulf %170, %149 : vector<2x32xf32>
    %173 = arith.mulf %169, %168 : vector<2x32xf32>
    %174 = arith.addf %172, %173 : vector<2x32xf32>
    %175 = math.tanh %174 : vector<2x32xf32>
    %176 = arith.mulf %171, %175 : vector<2x32xf32>
    %177 = arith.index_cast %c6_i32 : i32 to index
    %c0_46 = arith.constant 0 : index
    %c0_47 = arith.constant 0 : index
    %178 = vector.load %arg3[%177, %c0_46, %c0_47] : memref<8x2x32xf32, #tpu.memory_space<vmem>>, vector<1x2x32xf32>
    %179 = vector.shape_cast %178 : vector<1x2x32xf32> to vector<2x32xf32>
    %180 = vector.shape_cast %176 : vector<2x32xf32> to vector<1x2x32xf32>
    tpu.vector_store %arg3[%177, %c0_46, %c0_47], %180 {strides = array<i32>} : memref<8x2x32xf32, #tpu.memory_space<vmem>>, vector<1x2x32xf32>,
    %c7_i32 = arith.constant 7 : i32
    %181 = arith.index_cast %c7_i32 : i32 to index
    %c0_48 = arith.constant 0 : index
    %c0_49 = arith.constant 0 : index
    %182 = vector.load %arg1[%181, %c0_48, %c0_49] : memref<8x2x128xf32, #tpu.memory_space<vmem>>, vector<1x2x128xf32>
    %183 = vector.shape_cast %182 : vector<1x2x128xf32> to vector<2x128xf32>
    %cst_50 = arith.constant dense<0.000000e+00> : vector<2x128xf32>
    %184 = tpu.matmul %176, %3, %cst_50 {dimension_numbers = #tpu.dot_dimension_numbers<[1], [0], [0], [1], [0, 0, 1, 1], [], []>} : vector<2x32xf32>, vector<32x128xf32>, vector<2x128xf32> -> vector<2x128xf32>
    %185 = arith.addf %183, %184 : vector<2x128xf32>
    %186 = vector.extract_strided_slice %185 {offsets = [0, 0], sizes = [2, 96], strides = [1, 1]} : vector<2x128xf32> to vector<2x96xf32>
    %187 = arith.negf %186 : vector<2x96xf32>
    %188 = math.exp %187 : vector<2x96xf32>
    %cst_51 = arith.constant 1.000000e+00 : f32
    %189 = vector.broadcast %cst_51 : f32 to vector<2x96xf32>
    %190 = arith.addf %189, %188 : vector<2x96xf32>
    %191 = arith.divf %189, %190 : vector<2x96xf32>
    %192 = vector.extract_strided_slice %185 {offsets = [0, 96], sizes = [2, 32], strides = [1, 1]} : vector<2x128xf32> to vector<2x32xf32>
    %193 = math.tanh %192 : vector<2x32xf32>
    %194 = vector.extract_strided_slice %191 {offsets = [0, 0], sizes = [2, 32], strides = [1, 1]} : vector<2x96xf32> to vector<2x32xf32>
    %195 = vector.extract_strided_slice %191 {offsets = [0, 32], sizes = [2, 32], strides = [1, 1]} : vector<2x96xf32> to vector<2x32xf32>
    %196 = vector.extract_strided_slice %191 {offsets = [0, 64], sizes = [2, 32], strides = [1, 1]} : vector<2x96xf32> to vector<2x32xf32>
    %197 = arith.mulf %195, %174 : vector<2x32xf32>
    %198 = arith.mulf %194, %193 : vector<2x32xf32>
    %199 = arith.addf %197, %198 : vector<2x32xf32>
    %200 = math.tanh %199 : vector<2x32xf32>
    %201 = arith.mulf %196, %200 : vector<2x32xf32>
    %202 = arith.index_cast %c7_i32 : i32 to index
    %c0_52 = arith.constant 0 : index
    %c0_53 = arith.constant 0 : index
    %203 = vector.load %arg3[%202, %c0_52, %c0_53] : memref<8x2x32xf32, #tpu.memory_space<vmem>>, vector<1x2x32xf32>
    %204 = vector.shape_cast %203 : vector<1x2x32xf32> to vector<2x32xf32>
    %205 = vector.shape_cast %201 : vector<2x32xf32> to vector<1x2x32xf32>
    tpu.vector_store %arg3[%202, %c0_52, %c0_53], %205 {strides = array<i32>} : memref<8x2x32xf32, #tpu.memory_space<vmem>>, vector<1x2x32xf32>,
    %c8_i32 = arith.constant 8 : i32
    %c0_54 = arith.constant 0 : index
    %c0_55 = arith.constant 0 : index
    %206 = vector.load %arg4[%c0_54, %c0_55] : memref<2x32xf32, #tpu.memory_space<vmem>>, vector<2x32xf32>
    tpu.vector_store %arg4[%c0_54, %c0_55], %201 {strides = array<i32>} : memref<2x32xf32, #tpu.memory_space<vmem>>, vector<2x32xf32>,
    %c0_56 = arith.constant 0 : index
    %c0_57 = arith.constant 0 : index
    %207 = vector.load %arg5[%c0_56, %c0_57] : memref<2x32xf32, #tpu.memory_space<vmem>>, vector<2x32xf32>
    tpu.vector_store %arg5[%c0_56, %c0_57], %199 {strides = array<i32>} : memref<2x32xf32, #tpu.memory_space<vmem>>, vector<2x32xf32>,
    return
  }
  func.func @transform_0(%arg0: i32) -> (i32, i32, i32) {
    %c0_i32 = arith.constant 0 : i32
    %c0_i32_0 = arith.constant 0 : i32
    %c0_i32_1 = arith.constant 0 : i32
    return %arg0, %c0_i32, %c0_i32_0 : i32, i32, i32
  }
  func.func @transform_1(%arg0: i32) -> (i32, i32) {
    %c0_i32 = arith.constant 0 : i32
    %c0_i32_0 = arith.constant 0 : i32
    %c0_i32_1 = arith.constant 0 : i32
    return %c0_i32, %c0_i32_0 : i32, i32
  }
  func.func @transform_2(%arg0: i32) -> (i32, i32, i32) {
    %c0_i32 = arith.constant 0 : i32
    %c0_i32_0 = arith.constant 0 : i32
    %c0_i32_1 = arith.constant 0 : i32
    return %arg0, %c0_i32, %c0_i32_0 : i32, i32, i32
  }
}

</mosaic_0001>

<llo_original>
// kernel: tpu_custom_call.1
$region0: #{tpu_custom_call.1}
  #allocation0 [shape = 'u32[]', space=smem, size = 0x4, offset = 0x4, fixed_abs, tag = 'smem constant byte address 0x4 - core index']
  #allocation1 [shape = 'u32[144,128]{1,0:T(1,128)}', space=vmem, size = 0x12000, scoped, tag = 'internal scratch']
  #allocation2 [shape = 'f32[2,32]{1,0:T(2,128)}', space=vmem, size = 0x400, scoped, tag = 'scratch operand']
  #allocation3 [shape = 'f32[2,32]{1,0:T(2,128)}', space=vmem, size = 0x400, scoped, tag = 'scratch operand']
  %s0 = inlined_call_operand.hbm [shape: f32[8,2,128], index: 0, kind: input, shape index: {}]
  %s1 = inlined_call_operand.hbm [shape: f32[32,128], index: 1, kind: input, shape index: {}]
  %s2 = inlined_call_operand.hbm [shape: f32[8,2,32], index: 2, kind: output, shape index: {}]
  %s3 = sld [smem:[#allocation0]]
  $region30: #{tpu_custom_call.1} parent=0
    _
  %s5 = ssub.s32 1, %s3
  %s6 = scalar_select 0, %s5, %s3
  $region1: #{tpu_custom_call.1} parent=0
    #allocation4 [shape = 'u8[8192]{0}', space=vmem, size = 0x2000, scoped, tag = 'input window, operand 0, single buffered']
    #allocation5 [shape = 's32[1]{0}', space=sflag, size = 0x4, scoped, tag = 'scoped memory for tpu_custom_call.1']
    #allocation6 [shape = 's32[1]{0}', space=sflag, size = 0x4, scoped, tag = 'scoped memory for tpu_custom_call.1']
    #allocation7 [shape = 'u8[16384]{0}', space=vmem, size = 0x4000, scoped, tag = 'input window, operand 1, single buffered']
    #allocation8 [shape = 's32[1]{0}', space=sflag, size = 0x4, scoped, tag = 'scoped memory for tpu_custom_call.1']
    #allocation9 [shape = 'u8[8192]{0}', space=vmem, size = 0x2000, scoped, tag = 'output window, operand 0, single buffered']
    %7 = vsyncpa [#allocation5], 0
    %8 = vsyncpa [#allocation8], 0
    %9 = vsyncpa [#allocation6], 0
    // Predicated region
    $region2: #{tpu_custom_call.1} parent=1 // pred_check
      _
    $region3: #{tpu_custom_call.1} parent=1 // pred_check_branch
      %11 = sbr.rel (0) target = $region5
    $region4: #{tpu_custom_call.1} parent=1 // pred_region
      %s13 = ssub.s32 256, 256
      %14 = vsyncadd [#allocation5], %s13
      %s15 = sshll.u32 [#allocation4], 4
      %s16 = int_to_ptr.vmem [resolvable:$true] %s15
      %21 = dma.hbm_to_vmem [thread:$0]  %s0, 256, %s16, [#allocation5], 32, 32, 2
    $region5: #{tpu_custom_call.1} parent=1 // pred_fallthru
      _
    // Predicated region
    $region6: #{tpu_custom_call.1} parent=1 // pred_check
      _
    $region7: #{tpu_custom_call.1} parent=1 // pred_check_branch
      %23 = sbr.rel (0) target = $region9
    $region8: #{tpu_custom_call.1} parent=1 // pred_region
      %s25 = ssub.s32 512, 512
      %26 = vsyncadd [#allocation8], %s25
      %s27 = sshll.u32 [#allocation7], 4
      %s28 = int_to_ptr.vmem [resolvable:$true] %s27
      %33 = dma.hbm_to_vmem [thread:$0]  %s1, 512, %s28, [#allocation8], 128, 128, 8
    $region9: #{tpu_custom_call.1} parent=1 // pred_fallthru
      _
    // Predicated region
    $region10: #{tpu_custom_call.1} parent=1 // pred_check
      _
    $region11: #{tpu_custom_call.1} parent=1 // pred_check_branch
      %35 = sbr.rel (0) target = $region13
    $region12: #{tpu_custom_call.1} parent=1 // pred_region
      %36 = dma.done [#allocation5], 256
    $region13: #{tpu_custom_call.1} parent=1 // pred_fallthru
      _
    // Predicated region
    $region14: #{tpu_custom_call.1} parent=1 // pred_check
      _
    $region15: #{tpu_custom_call.1} parent=1 // pred_check_branch
      %38 = sbr.rel (0) target = $region17
    $region16: #{tpu_custom_call.1} parent=1 // pred_region
      %39 = dma.done [#allocation8], 512
    $region17: #{tpu_custom_call.1} parent=1 // pred_fallthru
      _
    %p40 = scmp.eq.s32.totalorder 0, 0
    // Predicated region
    $region18: #{tpu_custom_call.1} parent=1 // pred_check
      %p41 = pneg %p40
    $region19: #{tpu_custom_call.1} parent=1 // pred_check_branch
      %43 = sbr.rel (%p41) target = $region21
    $region20: #{tpu_custom_call.1} parent=1 // pred_region
      %vm44 = vcmask 254976
      %45 = vst.msk [vmem:[#allocation2] sm:$0x3] %vm44, 0.0
      %46 = vst.msk [vmem:[#allocation3] sm:$0x3] %vm44, 0.0
    $region21: #{tpu_custom_call.1} parent=1 // pred_fallthru
      _
    %v47 = vld [vmem:[#allocation7] sm:$0xff]
    %v48 = vld [vmem:[#allocation7 + $0x8] sm:$0xff]
    %v49 = vld [vmem:[#allocation7 + $0x10] sm:$0xff]
    %v50 = vld [vmem:[#allocation7 + $0x18] sm:$0xff]
    %v51 = vld [vmem:[#allocation2] sm:$0x3]
    %v52 = vld [vmem:[#allocation3] sm:$0x3]
    %v53 = vld [vmem:[#allocation4] sm:$0x3]
    %vm54 = vcmask 261120
    %v56 = vsel %vm54, %v51, 0
    %58 = vmatprep.subr.mxu0 0.0
    %59 = vmatpush1.msra.mxu0 %v47
    %60 = vmatprep.subr.mxu0 0.0
    %61 = vmatpush1.msra.mxu0 %v48
    %62 = vmatprep.subr.mxu0 0.0
    %63 = vmatpush1.msra.mxu0 %v49
    %64 = vmatprep.subr.mxu0 0.0
    %65 = vmatpush1.msra.mxu0 %v50
    %66 = vmatprep.subr.mxu0 0.0
    %67 = vmatpush1.msra.mxu0 0.0
    %68 = vmatprep.subr.mxu0 0.0
    %69 = vmatpush1.msra.mxu0 0.0
    %70 = vmatprep.subr.mxu0 0.0
    %71 = vmatpush1.msra.mxu0 0.0
    %72 = vmatprep.subr.mxu0 0.0
    %73 = vmatpush1.msra.mxu0 0.0
    %74 = vmatprep.subr.mxu0 0.0
    %75 = vmatpush1.msra.mxu0 0.0
    %76 = vmatprep.subr.mxu0 0.0
    %77 = vmatpush1.msra.mxu0 0.0
    %78 = vmatprep.subr.mxu0 0.0
    %79 = vmatpush1.msra.mxu0 0.0
    %80 = vmatprep.subr.mxu0 0.0
    %81 = vmatpush1.msra.mxu0 0.0
    %82 = vmatprep.subr.mxu0 0.0
    %83 = vmatpush1.msra.mxu0 0.0
    %84 = vmatprep.subr.mxu0 0.0
    %85 = vmatpush1.msra.mxu0 0.0
    %86 = vmatprep.subr.mxu0 0.0
    %87 = vmatpush1.msra.mxu0 0.0
    %88 = vmatprep.subr.mxu0 0.0
    %89 = vmatpush1.msra.mxu0 0.0
    %90 = vmatprep.subr.mxu0 0.0
    %91 = vmatpush1.msra.mxu0 0.0
    %92 = vmatprep.subr.mxu0 0.0
    %93 = vmatpush1.msra.mxu0 0.0
    %94 = vmatprep.subr.mxu0 0.0
    %95 = vmatpush1.msra.mxu0 0.0
    %96 = vmatprep.subr.mxu0 0.0
    %97 = vmatpush1.msra.mxu0 0.0
    %98 = vmatprep.subr.mxu0 0.0
    %99 = vmatpush1.msra.mxu0 0.0
    %100 = vmatprep.subr.mxu0 0.0
    %101 = vmatpush1.msra.mxu0 0.0
    %102 = vmatprep.subr.mxu0 0.0
    %103 = vmatpush1.msra.mxu0 0.0
    %104 = vmatprep.subr.mxu0 0.0
    %105 = vmatpush1.msra.mxu0 0.0
    %106 = vmatprep.subr.mxu0 0.0
    %107 = vmatpush1.msra.mxu0 0.0
    %108 = vmatprep.subr.mxu0 0.0
    %109 = vmatpush1.msra.mxu0 0.0
    %110 = vmatprep.subr.mxu0 0.0
    %111 = vmatpush1.msra.mxu0 0.0
    %112 = vmatprep.subr.mxu0 0.0
    %113 = vmatpush1.msra.mxu0 0.0
    %114 = vmatprep.subr.mxu0 0.0
    %115 = vmatpush1.msra.mxu0 0.0
    %116 = vmatprep.subr.mxu0 0.0
    %117 = vmatpush1.msra.mxu0 0.0
    %118 = vmatprep.subr.mxu0 0.0
    %119 = vmatpush1.msra.mxu0 0.0
    %120 = vmatprep.subr.mxu0 0.0
    %121 = vmatpush1.msra.mxu0 0.0
    %122 = vmatprep.mubr.f32.mxu0 0.0
    %123 = vmatmul.mubr.f32.gmra.mrb[0].mxu0 %v56
    %v124 = vpop.f32.mrb[0].mxu0
    %v125 = vadd.f32 0.0, %v124
    %v126 = vpop.f32.mrb[0].mxu0
    %127 = vdwg.mxu0
    %v128 = vadd.f32 %v53, %v125
    %v129 = vxor.u32 %v128, 2147483648
    %v130 = vmul.f32 %v129, 1.442695
    %v131 = vpow.pop %v130
    %v132 = vadd.f32 %v131, 1.0
    %v133 = vrcp.pop %v132
    %v134 = vmul.f32 1.0, %v133
    %v135 = vtanh.pop %v128
    %137 = vrot.lane.b32.xlu0 %v52, 32
    %v138 = vpop.permute.xlu0 %137
    %v140 = vmul.f32 %v134, %v138
    %142 = vrot.lane.b32.xlu0 %v135, 32
    %v143 = vpop.permute.xlu0 %142
    %v145 = vmul.f32 %v134, %v143
    %147 = vrot.lane.b32.xlu0 %v145, 32
    %v148 = vpop.permute.xlu0 %147
    %v150 = vadd.f32 %v140, %v148
    %v151 = vtanh.pop %v150
    %153 = vrot.lane.b32.xlu0 %v151, 32
    %v154 = vpop.permute.xlu0 %153
    %v156 = vmul.f32 %v134, %v154
    %158 = vrot.lane.b32.xlu0 %v156, 64
    %v159 = vpop.permute.xlu0 %158
    %vm161 = vcmask 254976
    %162 = vst.msk [vmem:[#allocation9] sm:$0x3] %vm161, %v159
    %s163 = scalar_lea.vmem [#allocation4], 2
    %v164 = vld [vmem:[%s163] sm:$0x3]
    %v165 = vsel %vm54, %v159, 0
    %167 = vmatprep.subr.mxu0 0.0
    %168 = vmatpush1.msra.mxu0 %v47
    %169 = vmatprep.subr.mxu0 0.0
    %170 = vmatpush1.msra.mxu0 %v48
    %171 = vmatprep.subr.mxu0 0.0
    %172 = vmatpush1.msra.mxu0 %v49
    %173 = vmatprep.subr.mxu0 0.0
    %174 = vmatpush1.msra.mxu0 %v50
    %175 = vmatprep.subr.mxu0 0.0
    %176 = vmatpush1.msra.mxu0 0.0
    %177 = vmatprep.subr.mxu0 0.0
    %178 = vmatpush1.msra.mxu0 0.0
    %179 = vmatprep.subr.mxu0 0.0
    %180 = vmatpush1.msra.mxu0 0.0
    %181 = vmatprep.subr.mxu0 0.0
    %182 = vmatpush1.msra.mxu0 0.0
    %183 = vmatprep.subr.mxu0 0.0
    %184 = vmatpush1.msra.mxu0 0.0
    %185 = vmatprep.subr.mxu0 0.0
    %186 = vmatpush1.msra.mxu0 0.0
    %187 = vmatprep.subr.mxu0 0.0
    %188 = vmatpush1.msra.mxu0 0.0
    %189 = vmatprep.subr.mxu0 0.0
    %190 = vmatpush1.msra.mxu0 0.0
    %191 = vmatprep.subr.mxu0 0.0
    %192 = vmatpush1.msra.mxu0 0.0
    %193 = vmatprep.subr.mxu0 0.0
    %194 = vmatpush1.msra.mxu0 0.0
    %195 = vmatprep.subr.mxu0 0.0
    %196 = vmatpush1.msra.mxu0 0.0
    %197 = vmatprep.subr.mxu0 0.0
    %198 = vmatpush1.msra.mxu0 0.0
    %199 = vmatprep.subr.mxu0 0.0
    %200 = vmatpush1.msra.mxu0 0.0
    %201 = vmatprep.subr.mxu0 0.0
    %202 = vmatpush1.msra.mxu0 0.0
    %203 = vmatprep.subr.mxu0 0.0
    %204 = vmatpush1.msra.mxu0 0.0
    %205 = vmatprep.subr.mxu0 0.0
    %206 = vmatpush1.msra.mxu0 0.0
    %207 = vmatprep.subr.mxu0 0.0
    %208 = vmatpush1.msra.mxu0 0.0
    %209 = vmatprep.subr.mxu0 0.0
    %210 = vmatpush1.msra.mxu0 0.0
    %211 = vmatprep.subr.mxu0 0.0
    %212 = vmatpush1.msra.mxu0 0.0
    %213 = vmatprep.subr.mxu0 0.0
    %214 = vmatpush1.msra.mxu0 0.0
    %215 = vmatprep.subr.mxu0 0.0
    %216 = vmatpush1.msra.mxu0 0.0
    %217 = vmatprep.subr.mxu0 0.0
    %218 = vmatpush1.msra.mxu0 0.0
    %219 = vmatprep.subr.mxu0 0.0
    %220 = vmatpush1.msra.mxu0 0.0
    %221 = vmatprep.subr.mxu0 0.0
    %222 = vmatpush1.msra.mxu0 0.0
    %223 = vmatprep.subr.mxu0 0.0
    %224 = vmatpush1.msra.mxu0 0.0
    %225 = vmatprep.subr.mxu0 0.0
    %226 = vmatpush1.msra.mxu0 0.0
    %227 = vmatprep.subr.mxu0 0.0
    %228 = vmatpush1.msra.mxu0 0.0
    %229 = vmatprep.subr.mxu0 0.0
    %230 = vmatpush1.msra.mxu0 0.0
    %231 = vmatprep.mubr.f32.mxu0 0.0
    %232 = vmatmul.mubr.f32.gmra.mrb[0].mxu0 %v165
    %v233 = vpop.f32.mrb[0].mxu0
    %v234 = vadd.f32 0.0, %v233
    %v235 = vpop.f32.mrb[0].mxu0
    %236 = vdwg.mxu0
    %v237 = vadd.f32 %v164, %v234
    %v238 = vxor.u32 %v237, 2147483648
    %v239 = vmul.f32 %v238, 1.442695
    %v240 = vpow.pop %v239
    %v241 = vadd.f32 %v240, 1.0
    %v242 = vrcp.pop %v241
    %v243 = vmul.f32 1.0, %v242
    %v244 = vtanh.pop %v237
    %v245 = vmul.f32 %v243, %v150
    %247 = vrot.lane.b32.xlu0 %v244, 32
    %v248 = vpop.permute.xlu0 %247
    %v250 = vmul.f32 %v243, %v248
    %252 = vrot.lane.b32.xlu0 %v250, 32
    %v253 = vpop.permute.xlu0 %252
    %v255 = vadd.f32 %v245, %v253
    %v256 = vtanh.pop %v255
    %258 = vrot.lane.b32.xlu0 %v256, 32
    %v259 = vpop.permute.xlu0 %258
    %v261 = vmul.f32 %v243, %v259
    %263 = vrot.lane.b32.xlu0 %v261, 64
    %v264 = vpop.permute.xlu0 %263
    %s266 = scalar_lea.vmem [#allocation9], 2
    %267 = vst.msk [vmem:[%s266] sm:$0x3] %vm161, %v264
    %s268 = scalar_lea.vmem [#allocation4], 4
    %v269 = vld [vmem:[%s268] sm:$0x3]
    %v270 = vsel %vm54, %v264, 0
    %272 = vmatprep.subr.mxu0 0.0
    %273 = vmatpush1.msra.mxu0 %v47
    %274 = vmatprep.subr.mxu0 0.0
    %275 = vmatpush1.msra.mxu0 %v48
    %276 = vmatprep.subr.mxu0 0.0
    %277 = vmatpush1.msra.mxu0 %v49
    %278 = vmatprep.subr.mxu0 0.0
    %279 = vmatpush1.msra.mxu0 %v50
    %280 = vmatprep.subr.mxu0 0.0
    %281 = vmatpush1.msra.mxu0 0.0
    %282 = vmatprep.subr.mxu0 0.0
    %283 = vmatpush1.msra.mxu0 0.0
    %284 = vmatprep.subr.mxu0 0.0
    %285 = vmatpush1.msra.mxu0 0.0
    %286 = vmatprep.subr.mxu0 0.0
    %287 = vmatpush1.msra.mxu0 0.0
    %288 = vmatprep.subr.mxu0 0.0
    %289 = vmatpush1.msra.mxu0 0.0
    %290 = vmatprep.subr.mxu0 0.0
    %291 = vmatpush1.msra.mxu0 0.0
    %292 = vmatprep.subr.mxu0 0.0
    %293 = vmatpush1.msra.mxu0 0.0
    %294 = vmatprep.subr.mxu0 0.0
    %295 = vmatpush1.msra.mxu0 0.0
    %296 = vmatprep.subr.mxu0 0.0
    %297 = vmatpush1.msra.mxu0 0.0
    %298 = vmatprep.subr.mxu0 0.0
    %299 = vmatpush1.msra.mxu0 0.0
    %300 = vmatprep.subr.mxu0 0.0
    %301 = vmatpush1.msra.mxu0 0.0
    %302 = vmatprep.subr.mxu0 0.0
    %303 = vmatpush1.msra.mxu0 0.0
    %304 = vmatprep.subr.mxu0 0.0
    %305 = vmatpush1.msra.mxu0 0.0
    %306 = vmatprep.subr.mxu0 0.0
    %307 = vmatpush1.msra.mxu0 0.0
    %308 = vmatprep.subr.mxu0 0.0
    %309 = vmatpush1.msra.mxu0 0.0
    %310 = vmatprep.subr.mxu0 0.0
    %311 = vmatpush1.msra.mxu0 0.0
    %312 = vmatprep.subr.mxu0 0.0
    %313 = vmatpush1.msra.mxu0 0.0
    %314 = vmatprep.subr.mxu0 0.0
    %315 = vmatpush1.msra.mxu0 0.0
    %316 = vmatprep.subr.mxu0 0.0
    %317 = vmatpush1.msra.mxu0 0.0
    %318 = vmatprep.subr.mxu0 0.0
    %319 = vmatpush1.msra.mxu0 0.0
    %320 = vmatprep.subr.mxu0 0.0
    %321 = vmatpush1.msra.mxu0 0.0
    %322 = vmatprep.subr.mxu0 0.0
    %323 = vmatpush1.msra.mxu0 0.0
    %324 = vmatprep.subr.mxu0 0.0
    %325 = vmatpush1.msra.mxu0 0.0
    %326 = vmatprep.subr.mxu0 0.0
    %327 = vmatpush1.msra.mxu0 0.0
    %328 = vmatprep.subr.mxu0 0.0
    %329 = vmatpush1.msra.mxu0 0.0
    %330 = vmatprep.subr.mxu0 0.0
    %331 = vmatpush1.msra.mxu0 0.0
    %332 = vmatprep.subr.mxu0 0.0
    %333 = vmatpush1.msra.mxu0 0.0
    %334 = vmatprep.subr.mxu0 0.0
    %335 = vmatpush1.msra.mxu0 0.0
    %336 = vmatprep.mubr.f32.mxu0 0.0
    %337 = vmatmul.mubr.f32.gmra.mrb[0].mxu0 %v270
    %v338 = vpop.f32.mrb[0].mxu0
    %v339 = vadd.f32 0.0, %v338
    %v340 = vpop.f32.mrb[0].mxu0
    %341 = vdwg.mxu0
    %v342 = vadd.f32 %v269, %v339
    %v343 = vxor.u32 %v342, 2147483648
    %v344 = vmul.f32 %v343, 1.442695
    %v345 = vpow.pop %v344
    %v346 = vadd.f32 %v345, 1.0
    %v347 = vrcp.pop %v346
    %v348 = vmul.f32 1.0, %v347
    %v349 = vtanh.pop %v342
    %v350 = vmul.f32 %v348, %v255
    %352 = vrot.lane.b32.xlu0 %v349, 32
    %v353 = vpop.permute.xlu0 %352
    %v355 = vmul.f32 %v348, %v353
    %357 = vrot.lane.b32.xlu0 %v355, 32
    %v358 = vpop.permute.xlu0 %357
    %v360 = vadd.f32 %v350, %v358
    %v361 = vtanh.pop %v360
    %363 = vrot.lane.b32.xlu0 %v361, 32
    %v364 = vpop.permute.xlu0 %363
    %v366 = vmul.f32 %v348, %v364
    %368 = vrot.lane.b32.xlu0 %v366, 64
    %v369 = vpop.permute.xlu0 %368
    %s371 = scalar_lea.vmem [#allocation9], 4
    %372 = vst.msk [vmem:[%s371] sm:$0x3] %vm161, %v369
    %s373 = scalar_lea.vmem [#allocation4], 6
    %v374 = vld [vmem:[%s373] sm:$0x3]
    %v375 = vsel %vm54, %v369, 0
    %377 = vmatprep.subr.mxu0 0.0
    %378 = vmatpush1.msra.mxu0 %v47
    %379 = vmatprep.subr.mxu0 0.0
    %380 = vmatpush1.msra.mxu0 %v48
    %381 = vmatprep.subr.mxu0 0.0
    %382 = vmatpush1.msra.mxu0 %v49
    %383 = vmatprep.subr.mxu0 0.0
    %384 = vmatpush1.msra.mxu0 %v50
    %385 = vmatprep.subr.mxu0 0.0
    %386 = vmatpush1.msra.mxu0 0.0
    %387 = vmatprep.subr.mxu0 0.0
    %388 = vmatpush1.msra.mxu0 0.0
    %389 = vmatprep.subr.mxu0 0.0
    %390 = vmatpush1.msra.mxu0 0.0
    %391 = vmatprep.subr.mxu0 0.0
    %392 = vmatpush1.msra.mxu0 0.0
    %393 = vmatprep.subr.mxu0 0.0
    %394 = vmatpush1.msra.mxu0 0.0
    %395 = vmatprep.subr.mxu0 0.0
    %396 = vmatpush1.msra.mxu0 0.0
    %397 = vmatprep.subr.mxu0 0.0
    %398 = vmatpush1.msra.mxu0 0.0
    %399 = vmatprep.subr.mxu0 0.0
    %400 = vmatpush1.msra.mxu0 0.0
    %401 = vmatprep.subr.mxu0 0.0
    %402 = vmatpush1.msra.mxu0 0.0
    %403 = vmatprep.subr.mxu0 0.0
    %404 = vmatpush1.msra.mxu0 0.0
    %405 = vmatprep.subr.mxu0 0.0
    %406 = vmatpush1.msra.mxu0 0.0
    %407 = vmatprep.subr.mxu0 0.0
    %408 = vmatpush1.msra.mxu0 0.0
    %409 = vmatprep.subr.mxu0 0.0
    %410 = vmatpush1.msra.mxu0 0.0
    %411 = vmatprep.subr.mxu0 0.0
    %412 = vmatpush1.msra.mxu0 0.0
    %413 = vmatprep.subr.mxu0 0.0
    %414 = vmatpush1.msra.mxu0 0.0
    %415 = vmatprep.subr.mxu0 0.0
    %416 = vmatpush1.msra.mxu0 0.0
    %417 = vmatprep.subr.mxu0 0.0
    %418 = vmatpush1.msra.mxu0 0.0
    %419 = vmatprep.subr.mxu0 0.0
    %420 = vmatpush1.msra.mxu0 0.0
    %421 = vmatprep.subr.mxu0 0.0
    %422 = vmatpush1.msra.mxu0 0.0
    %423 = vmatprep.subr.mxu0 0.0
    %424 = vmatpush1.msra.mxu0 0.0
    %425 = vmatprep.subr.mxu0 0.0
    %426 = vmatpush1.msra.mxu0 0.0
    %427 = vmatprep.subr.mxu0 0.0
    %428 = vmatpush1.msra.mxu0 0.0
    %429 = vmatprep.subr.mxu0 0.0
    %430 = vmatpush1.msra.mxu0 0.0
    %431 = vmatprep.subr.mxu0 0.0
    %432 = vmatpush1.msra.mxu0 0.0
    %433 = vmatprep.subr.mxu0 0.0
    %434 = vmatpush1.msra.mxu0 0.0
    %435 = vmatprep.subr.mxu0 0.0
    %436 = vmatpush1.msra.mxu0 0.0
    %437 = vmatprep.subr.mxu0 0.0
    %438 = vmatpush1.msra.mxu0 0.0
    %439 = vmatprep.subr.mxu0 0.0
    %440 = vmatpush1.msra.mxu0 0.0
    %441 = vmatprep.mubr.f32.mxu0 0.0
    %442 = vmatmul.mubr.f32.gmra.mrb[0].mxu0 %v375
    %v443 = vpop.f32.mrb[0].mxu0
    %v444 = vadd.f32 0.0, %v443
    %v445 = vpop.f32.mrb[0].mxu0
    %446 = vdwg.mxu0
    %v447 = vadd.f32 %v374, %v444
    %v448 = vxor.u32 %v447, 2147483648
    %v449 = vmul.f32 %v448, 1.442695
    %v450 = vpow.pop %v449
    %v451 = vadd.f32 %v450, 1.0
    %v452 = vrcp.pop %v451
    %v453 = vmul.f32 1.0, %v452
    %v454 = vtanh.pop %v447
    %v455 = vmul.f32 %v453, %v360
    %457 = vrot.lane.b32.xlu0 %v454, 32
    %v458 = vpop.permute.xlu0 %457
    %v460 = vmul.f32 %v453, %v458
    %462 = vrot.lane.b32.xlu0 %v460, 32
    %v463 = vpop.permute.xlu0 %462
    %v465 = vadd.f32 %v455, %v463
    %v466 = vtanh.pop %v465
    %468 = vrot.lane.b32.xlu0 %v466, 32
    %v469 = vpop.permute.xlu0 %468
    %v471 = vmul.f32 %v453, %v469
    %473 = vrot.lane.b32.xlu0 %v471, 64
    %v474 = vpop.permute.xlu0 %473
    %s476 = scalar_lea.vmem [#allocation9], 6
    %477 = vst.msk [vmem:[%s476] sm:$0x3] %vm161, %v474
    %s478 = scalar_lea.vmem [#allocation4], 8
    %v479 = vld [vmem:[%s478] sm:$0x3]
    %v480 = vsel %vm54, %v474, 0
    %482 = vmatprep.subr.mxu0 0.0
    %483 = vmatpush1.msra.mxu0 %v47
    %484 = vmatprep.subr.mxu0 0.0
    %485 = vmatpush1.msra.mxu0 %v48
    %486 = vmatprep.subr.mxu0 0.0
    %487 = vmatpush1.msra.mxu0 %v49
    %488 = vmatprep.subr.mxu0 0.0
    %489 = vmatpush1.msra.mxu0 %v50
    %490 = vmatprep.subr.mxu0 0.0
    %491 = vmatpush1.msra.mxu0 0.0
    %492 = vmatprep.subr.mxu0 0.0
    %493 = vmatpush1.msra.mxu0 0.0
    %494 = vmatprep.subr.mxu0 0.0
    %495 = vmatpush1.msra.mxu0 0.0
    %496 = vmatprep.subr.mxu0 0.0
    %497 = vmatpush1.msra.mxu0 0.0
    %498 = vmatprep.subr.mxu0 0.0
    %499 = vmatpush1.msra.mxu0 0.0
    %500 = vmatprep.subr.mxu0 0.0
    %501 = vmatpush1.msra.mxu0 0.0
    %502 = vmatprep.subr.mxu0 0.0
    %503 = vmatpush1.msra.mxu0 0.0
    %504 = vmatprep.subr.mxu0 0.0
    %505 = vmatpush1.msra.mxu0 0.0
    %506 = vmatprep.subr.mxu0 0.0
    %507 = vmatpush1.msra.mxu0 0.0
    %508 = vmatprep.subr.mxu0 0.0
    %509 = vmatpush1.msra.mxu0 0.0
    %510 = vmatprep.subr.mxu0 0.0
    %511 = vmatpush1.msra.mxu0 0.0
    %512 = vmatprep.subr.mxu0 0.0
    %513 = vmatpush1.msra.mxu0 0.0
    %514 = vmatprep.subr.mxu0 0.0
    %515 = vmatpush1.msra.mxu0 0.0
    %516 = vmatprep.subr.mxu0 0.0
    %517 = vmatpush1.msra.mxu0 0.0
    %518 = vmatprep.subr.mxu0 0.0
    %519 = vmatpush1.msra.mxu0 0.0
    %520 = vmatprep.subr.mxu0 0.0
    %521 = vmatpush1.msra.mxu0 0.0
    %522 = vmatprep.subr.mxu0 0.0
    %523 = vmatpush1.msra.mxu0 0.0
    %524 = vmatprep.subr.mxu0 0.0
    %525 = vmatpush1.msra.mxu0 0.0
    %526 = vmatprep.subr.mxu0 0.0
    %527 = vmatpush1.msra.mxu0 0.0
    %528 = vmatprep.subr.mxu0 0.0
    %529 = vmatpush1.msra.mxu0 0.0
    %530 = vmatprep.subr.mxu0 0.0
    %531 = vmatpush1.msra.mxu0 0.0
    %532 = vmatprep.subr.mxu0 0.0
    %533 = vmatpush1.msra.mxu0 0.0
    %534 = vmatprep.subr.mxu0 0.0
    %535 = vmatpush1.msra.mxu0 0.0
    %536 = vmatprep.subr.mxu0 0.0
    %537 = vmatpush1.msra.mxu0 0.0
    %538 = vmatprep.subr.mxu0 0.0
    %539 = vmatpush1.msra.mxu0 0.0
    %540 = vmatprep.subr.mxu0 0.0
    %541 = vmatpush1.msra.mxu0 0.0
    %542 = vmatprep.subr.mxu0 0.0
    %543 = vmatpush1.msra.mxu0 0.0
    %544 = vmatprep.subr.mxu0 0.0
    %545 = vmatpush1.msra.mxu0 0.0
    %546 = vmatprep.mubr.f32.mxu0 0.0
    %547 = vmatmul.mubr.f32.gmra.mrb[0].mxu0 %v480
    %v548 = vpop.f32.mrb[0].mxu0
    %v549 = vadd.f32 0.0, %v548
    %v550 = vpop.f32.mrb[0].mxu0
    %551 = vdwg.mxu0
    %v552 = vadd.f32 %v479, %v549
    %v553 = vxor.u32 %v552, 2147483648
    %v554 = vmul.f32 %v553, 1.442695
    %v555 = vpow.pop %v554
    %v556 = vadd.f32 %v555, 1.0
    %v557 = vrcp.pop %v556
    %v558 = vmul.f32 1.0, %v557
    %v559 = vtanh.pop %v552
    %v560 = vmul.f32 %v558, %v465
    %562 = vrot.lane.b32.xlu0 %v559, 32
    %v563 = vpop.permute.xlu0 %562
    %v565 = vmul.f32 %v558, %v563
    %567 = vrot.lane.b32.xlu0 %v565, 32
    %v568 = vpop.permute.xlu0 %567
    %v570 = vadd.f32 %v560, %v568
    %v571 = vtanh.pop %v570
    %573 = vrot.lane.b32.xlu0 %v571, 32
    %v574 = vpop.permute.xlu0 %573
    %v576 = vmul.f32 %v558, %v574
    %578 = vrot.lane.b32.xlu0 %v576, 64
    %v579 = vpop.permute.xlu0 %578
    %s581 = scalar_lea.vmem [#allocation9], 8
    %582 = vst.msk [vmem:[%s581] sm:$0x3] %vm161, %v579
    %s583 = scalar_lea.vmem [#allocation4], 10
    %v584 = vld [vmem:[%s583] sm:$0x3]
    %v585 = vsel %vm54, %v579, 0
    %587 = vmatprep.subr.mxu0 0.0
    %588 = vmatpush1.msra.mxu0 %v47
    %589 = vmatprep.subr.mxu0 0.0
    %590 = vmatpush1.msra.mxu0 %v48
    %591 = vmatprep.subr.mxu0 0.0
    %592 = vmatpush1.msra.mxu0 %v49
    %593 = vmatprep.subr.mxu0 0.0
    %594 = vmatpush1.msra.mxu0 %v50
    %595 = vmatprep.subr.mxu0 0.0
    %596 = vmatpush1.msra.mxu0 0.0
    %597 = vmatprep.subr.mxu0 0.0
    %598 = vmatpush1.msra.mxu0 0.0
    %599 = vmatprep.subr.mxu0 0.0
    %600 = vmatpush1.msra.mxu0 0.0
    %601 = vmatprep.subr.mxu0 0.0
    %602 = vmatpush1.msra.mxu0 0.0
    %603 = vmatprep.subr.mxu0 0.0
    %604 = vmatpush1.msra.mxu0 0.0
    %605 = vmatprep.subr.mxu0 0.0
    %606 = vmatpush1.msra.mxu0 0.0
    %607 = vmatprep.subr.mxu0 0.0
    %608 = vmatpush1.msra.mxu0 0.0
    %609 = vmatprep.subr.mxu0 0.0
    %610 = vmatpush1.msra.mxu0 0.0
    %611 = vmatprep.subr.mxu0 0.0
    %612 = vmatpush1.msra.mxu0 0.0
    %613 = vmatprep.subr.mxu0 0.0
    %614 = vmatpush1.msra.mxu0 0.0
    %615 = vmatprep.subr.mxu0 0.0
    %616 = vmatpush1.msra.mxu0 0.0
    %617 = vmatprep.subr.mxu0 0.0
    %618 = vmatpush1.msra.mxu0 0.0
    %619 = vmatprep.subr.mxu0 0.0
    %620 = vmatpush1.msra.mxu0 0.0
    %621 = vmatprep.subr.mxu0 0.0
    %622 = vmatpush1.msra.mxu0 0.0
    %623 = vmatprep.subr.mxu0 0.0
    %624 = vmatpush1.msra.mxu0 0.0
    %625 = vmatprep.subr.mxu0 0.0
    %626 = vmatpush1.msra.mxu0 0.0
    %627 = vmatprep.subr.mxu0 0.0
    %628 = vmatpush1.msra.mxu0 0.0
    %629 = vmatprep.subr.mxu0 0.0
    %630 = vmatpush1.msra.mxu0 0.0
    %631 = vmatprep.subr.mxu0 0.0
    %632 = vmatpush1.msra.mxu0 0.0
    %633 = vmatprep.subr.mxu0 0.0
    %634 = vmatpush1.msra.mxu0 0.0
    %635 = vmatprep.subr.mxu0 0.0
    %636 = vmatpush1.msra.mxu0 0.0
    %637 = vmatprep.subr.mxu0 0.0
    %638 = vmatpush1.msra.mxu0 0.0
    %639 = vmatprep.subr.mxu0 0.0
    %640 = vmatpush1.msra.mxu0 0.0
    %641 = vmatprep.subr.mxu0 0.0
    %642 = vmatpush1.msra.mxu0 0.0
    %643 = vmatprep.subr.mxu0 0.0
    %644 = vmatpush1.msra.mxu0 0.0
    %645 = vmatprep.subr.mxu0 0.0
    %646 = vmatpush1.msra.mxu0 0.0
    %647 = vmatprep.subr.mxu0 0.0
    %648 = vmatpush1.msra.mxu0 0.0
    %649 = vmatprep.subr.mxu0 0.0
    %650 = vmatpush1.msra.mxu0 0.0
    %651 = vmatprep.mubr.f32.mxu0 0.0
    %652 = vmatmul.mubr.f32.gmra.mrb[0].mxu0 %v585
    %v653 = vpop.f32.mrb[0].mxu0
    %v654 = vadd.f32 0.0, %v653
    %v655 = vpop.f32.mrb[0].mxu0
    %656 = vdwg.mxu0
    %v657 = vadd.f32 %v584, %v654
    %v658 = vxor.u32 %v657, 2147483648
    %v659 = vmul.f32 %v658, 1.442695
    %v660 = vpow.pop %v659
    %v661 = vadd.f32 %v660, 1.0
    %v662 = vrcp.pop %v661
    %v663 = vmul.f32 1.0, %v662
    %v664 = vtanh.pop %v657
    %v665 = vmul.f32 %v663, %v570
    %667 = vrot.lane.b32.xlu0 %v664, 32
    %v668 = vpop.permute.xlu0 %667
    %v670 = vmul.f32 %v663, %v668
    %672 = vrot.lane.b32.xlu0 %v670, 32
    %v673 = vpop.permute.xlu0 %672
    %v675 = vadd.f32 %v665, %v673
    %v676 = vtanh.pop %v675
    %678 = vrot.lane.b32.xlu0 %v676, 32
    %v679 = vpop.permute.xlu0 %678
    %v681 = vmul.f32 %v663, %v679
    %683 = vrot.lane.b32.xlu0 %v681, 64
    %v684 = vpop.permute.xlu0 %683
    %s686 = scalar_lea.vmem [#allocation9], 10
    %687 = vst.msk [vmem:[%s686] sm:$0x3] %vm161, %v684
    %s688 = scalar_lea.vmem [#allocation4], 12
    %v689 = vld [vmem:[%s688] sm:$0x3]
    %v690 = vsel %vm54, %v684, 0
    %692 = vmatprep.subr.mxu0 0.0
    %693 = vmatpush1.msra.mxu0 %v47
    %694 = vmatprep.subr.mxu0 0.0
    %695 = vmatpush1.msra.mxu0 %v48
    %696 = vmatprep.subr.mxu0 0.0
    %697 = vmatpush1.msra.mxu0 %v49
    %698 = vmatprep.subr.mxu0 0.0
    %699 = vmatpush1.msra.mxu0 %v50
    %700 = vmatprep.subr.mxu0 0.0
    %701 = vmatpush1.msra.mxu0 0.0
    %702 = vmatprep.subr.mxu0 0.0
    %703 = vmatpush1.msra.mxu0 0.0
    %704 = vmatprep.subr.mxu0 0.0
    %705 = vmatpush1.msra.mxu0 0.0
    %706 = vmatprep.subr.mxu0 0.0
    %707 = vmatpush1.msra.mxu0 0.0
    %708 = vmatprep.subr.mxu0 0.0
    %709 = vmatpush1.msra.mxu0 0.0
    %710 = vmatprep.subr.mxu0 0.0
    %711 = vmatpush1.msra.mxu0 0.0
    %712 = vmatprep.subr.mxu0 0.0
    %713 = vmatpush1.msra.mxu0 0.0
    %714 = vmatprep.subr.mxu0 0.0
    %715 = vmatpush1.msra.mxu0 0.0
    %716 = vmatprep.subr.mxu0 0.0
    %717 = vmatpush1.msra.mxu0 0.0
    %718 = vmatprep.subr.mxu0 0.0
    %719 = vmatpush1.msra.mxu0 0.0
    %720 = vmatprep.subr.mxu0 0.0
    %721 = vmatpush1.msra.mxu0 0.0
    %722 = vmatprep.subr.mxu0 0.0
    %723 = vmatpush1.msra.mxu0 0.0
    %724 = vmatprep.subr.mxu0 0.0
    %725 = vmatpush1.msra.mxu0 0.0
    %726 = vmatprep.subr.mxu0 0.0
    %727 = vmatpush1.msra.mxu0 0.0
    %728 = vmatprep.subr.mxu0 0.0
    %729 = vmatpush1.msra.mxu0 0.0
    %730 = vmatprep.subr.mxu0 0.0
    %731 = vmatpush1.msra.mxu0 0.0
    %732 = vmatprep.subr.mxu0 0.0
    %733 = vmatpush1.msra.mxu0 0.0
    %734 = vmatprep.subr.mxu0 0.0
    %735 = vmatpush1.msra.mxu0 0.0
    %736 = vmatprep.subr.mxu0 0.0
    %737 = vmatpush1.msra.mxu0 0.0
    %738 = vmatprep.subr.mxu0 0.0
    %739 = vmatpush1.msra.mxu0 0.0
    %740 = vmatprep.subr.mxu0 0.0
    %741 = vmatpush1.msra.mxu0 0.0
    %742 = vmatprep.subr.mxu0 0.0
    %743 = vmatpush1.msra.mxu0 0.0
    %744 = vmatprep.subr.mxu0 0.0
    %745 = vmatpush1.msra.mxu0 0.0
    %746 = vmatprep.subr.mxu0 0.0
    %747 = vmatpush1.msra.mxu0 0.0
    %748 = vmatprep.subr.mxu0 0.0
    %749 = vmatpush1.msra.mxu0 0.0
    %750 = vmatprep.subr.mxu0 0.0
    %751 = vmatpush1.msra.mxu0 0.0
    %752 = vmatprep.subr.mxu0 0.0
    %753 = vmatpush1.msra.mxu0 0.0
    %754 = vmatprep.subr.mxu0 0.0
    %755 = vmatpush1.msra.mxu0 0.0
    %756 = vmatprep.mubr.f32.mxu0 0.0
    %757 = vmatmul.mubr.f32.gmra.mrb[0].mxu0 %v690
    %v758 = vpop.f32.mrb[0].mxu0
    %v759 = vadd.f32 0.0, %v758
    %v760 = vpop.f32.mrb[0].mxu0
    %761 = vdwg.mxu0
    %v762 = vadd.f32 %v689, %v759
    %v763 = vxor.u32 %v762, 2147483648
    %v764 = vmul.f32 %v763, 1.442695
    %v765 = vpow.pop %v764
    %v766 = vadd.f32 %v765, 1.0
    %v767 = vrcp.pop %v766
    %v768 = vmul.f32 1.0, %v767
    %v769 = vtanh.pop %v762
    %v770 = vmul.f32 %v768, %v675
    %772 = vrot.lane.b32.xlu0 %v769, 32
    %v773 = vpop.permute.xlu0 %772
    %v775 = vmul.f32 %v768, %v773
    %777 = vrot.lane.b32.xlu0 %v775, 32
    %v778 = vpop.permute.xlu0 %777
    %v780 = vadd.f32 %v770, %v778
    %v781 = vtanh.pop %v780
    %783 = vrot.lane.b32.xlu0 %v781, 32
    %v784 = vpop.permute.xlu0 %783
    %v786 = vmul.f32 %v768, %v784
    %788 = vrot.lane.b32.xlu0 %v786, 64
    %v789 = vpop.permute.xlu0 %788
    %s791 = scalar_lea.vmem [#allocation9], 12
    %792 = vst.msk [vmem:[%s791] sm:$0x3] %vm161, %v789
    %s793 = scalar_lea.vmem [#allocation4], 14
    %v794 = vld [vmem:[%s793] sm:$0x3]
    %v795 = vsel %vm54, %v789, 0
    %797 = vmatprep.subr.mxu0 0.0
    %798 = vmatpush1.msra.mxu0 %v47
    %799 = vmatprep.subr.mxu0 0.0
    %800 = vmatpush1.msra.mxu0 %v48
    %801 = vmatprep.subr.mxu0 0.0
    %802 = vmatpush1.msra.mxu0 %v49
    %803 = vmatprep.subr.mxu0 0.0
    %804 = vmatpush1.msra.mxu0 %v50
    %805 = vmatprep.subr.mxu0 0.0
    %806 = vmatpush1.msra.mxu0 0.0
    %807 = vmatprep.subr.mxu0 0.0
    %808 = vmatpush1.msra.mxu0 0.0
    %809 = vmatprep.subr.mxu0 0.0
    %810 = vmatpush1.msra.mxu0 0.0
    %811 = vmatprep.subr.mxu0 0.0
    %812 = vmatpush1.msra.mxu0 0.0
    %813 = vmatprep.subr.mxu0 0.0
    %814 = vmatpush1.msra.mxu0 0.0
    %815 = vmatprep.subr.mxu0 0.0
    %816 = vmatpush1.msra.mxu0 0.0
    %817 = vmatprep.subr.mxu0 0.0
    %818 = vmatpush1.msra.mxu0 0.0
    %819 = vmatprep.subr.mxu0 0.0
    %820 = vmatpush1.msra.mxu0 0.0
    %821 = vmatprep.subr.mxu0 0.0
    %822 = vmatpush1.msra.mxu0 0.0
    %823 = vmatprep.subr.mxu0 0.0
    %824 = vmatpush1.msra.mxu0 0.0
    %825 = vmatprep.subr.mxu0 0.0
    %826 = vmatpush1.msra.mxu0 0.0
    %827 = vmatprep.subr.mxu0 0.0
    %828 = vmatpush1.msra.mxu0 0.0
    %829 = vmatprep.subr.mxu0 0.0
    %830 = vmatpush1.msra.mxu0 0.0
    %831 = vmatprep.subr.mxu0 0.0
    %832 = vmatpush1.msra.mxu0 0.0
    %833 = vmatprep.subr.mxu0 0.0
    %834 = vmatpush1.msra.mxu0 0.0
    %835 = vmatprep.subr.mxu0 0.0
    %836 = vmatpush1.msra.mxu0 0.0
    %837 = vmatprep.subr.mxu0 0.0
    %838 = vmatpush1.msra.mxu0 0.0
    %839 = vmatprep.subr.mxu0 0.0
    %840 = vmatpush1.msra.mxu0 0.0
    %841 = vmatprep.subr.mxu0 0.0
    %842 = vmatpush1.msra.mxu0 0.0
    %843 = vmatprep.subr.mxu0 0.0
    %844 = vmatpush1.msra.mxu0 0.0
    %845 = vmatprep.subr.mxu0 0.0
    %846 = vmatpush1.msra.mxu0 0.0
    %847 = vmatprep.subr.mxu0 0.0
    %848 = vmatpush1.msra.mxu0 0.0
    %849 = vmatprep.subr.mxu0 0.0
    %850 = vmatpush1.msra.mxu0 0.0
    %851 = vmatprep.subr.mxu0 0.0
    %852 = vmatpush1.msra.mxu0 0.0
    %853 = vmatprep.subr.mxu0 0.0
    %854 = vmatpush1.msra.mxu0 0.0
    %855 = vmatprep.subr.mxu0 0.0
    %856 = vmatpush1.msra.mxu0 0.0
    %857 = vmatprep.subr.mxu0 0.0
    %858 = vmatpush1.msra.mxu0 0.0
    %859 = vmatprep.subr.mxu0 0.0
    %860 = vmatpush1.msra.mxu0 0.0
    %861 = vmatprep.mubr.f32.mxu0 0.0
    %862 = vmatmul.mubr.f32.gmra.mrb[0].mxu0 %v795
    %v863 = vpop.f32.mrb[0].mxu0
    %v864 = vadd.f32 0.0, %v863
    %v865 = vpop.f32.mrb[0].mxu0
    %866 = vdwg.mxu0
    %v867 = vadd.f32 %v794, %v864
    %v868 = vxor.u32 %v867, 2147483648
    %v869 = vmul.f32 %v868, 1.442695
    %v870 = vpow.pop %v869
    %v871 = vadd.f32 %v870, 1.0
    %v872 = vrcp.pop %v871
    %v873 = vmul.f32 1.0, %v872
    %v874 = vtanh.pop %v867
    %v875 = vmul.f32 %v873, %v780
    %877 = vrot.lane.b32.xlu0 %v874, 32
    %v878 = vpop.permute.xlu0 %877
    %v880 = vmul.f32 %v873, %v878
    %882 = vrot.lane.b32.xlu0 %v880, 32
    %v883 = vpop.permute.xlu0 %882
    %v885 = vadd.f32 %v875, %v883
    %v886 = vtanh.pop %v885
    %888 = vrot.lane.b32.xlu0 %v886, 32
    %v889 = vpop.permute.xlu0 %888
    %v891 = vmul.f32 %v873, %v889
    %893 = vrot.lane.b32.xlu0 %v891, 64
    %v894 = vpop.permute.xlu0 %893
    %s896 = scalar_lea.vmem [#allocation9], 14
    %897 = vst.msk [vmem:[%s896] sm:$0x3] %vm161, %v894
    %898 = vst.msk [vmem:[#allocation2] sm:$0x3] %vm161, %v894
    %900 = vrot.lane.b32.xlu0 %v885, 96
    %v901 = vpop.permute.xlu0 %900
    %903 = vst.msk [vmem:[#allocation3] sm:$0x3] %vm161, %v901
    // Predicated region
    $region22: #{tpu_custom_call.1} parent=1 // pred_check
      _
    $region23: #{tpu_custom_call.1} parent=1 // pred_check_branch
      %905 = sbr.rel (0) target = $region25
    $region24: #{tpu_custom_call.1} parent=1 // pred_region
      %s907 = ssub.s32 256, 256
      %908 = vsyncadd [#allocation6], %s907
      %s909 = sshll.u32 [#allocation9], 4
      %s910 = int_to_ptr.vmem [resolvable:$true] %s909
      %915 = dma.vmem_to_hbm [thread:$0]  %s910, 256, %s2, [#allocation6], 32, 32, 2
    $region25: #{tpu_custom_call.1} parent=1 // pred_fallthru
      _
    // Predicated region
    $region26: #{tpu_custom_call.1} parent=1 // pred_check
      _
    $region27: #{tpu_custom_call.1} parent=1 // pred_check_branch
      %917 = sbr.rel (0) target = $region29
    $region28: #{tpu_custom_call.1} parent=1 // pred_region
      %918 = dma.done [#allocation6], 256
    $region29: #{tpu_custom_call.1} parent=1 // pred_fallthru
      _
    %919 = vsyncpa [#allocation5], 1
    %920 = vsyncpa [#allocation8], 1
    %921 = vsyncpa [#allocation6], 1

</llo_original>
